<compile_context>
chip_gen: v6e
topology: v6e:2x2x1
jax: 0.10.0
libtpu: 0.0.40
codegen_flags: <defaults>
</compile_context>

<pallas_src>
import functools

import jax
import jax.numpy as jnp
from jax.experimental import pallas as pl
from jax.experimental.pallas import tpu as pltpu

_MASK_NONE = "none"
_MASK_SHARED = "shared"      # batch-invariant, resident [S, 64] block
_MASK_BATCHED = "batched"    # per-(batch, position), tiled [TB*S, 64] blocks


def _self_attend_kernel(*refs, mask_mode, seq_len):
    if mask_mode == _MASK_NONE:
        (x_ref, w1_ref, b1_ref, wt_ref, bt_ref, wg_ref, bg_ref, o_ref) = refs
        mask_ref = None
    else:
        (x_ref, mask_ref, w1_ref, b1_ref, wt_ref, bt_ref, wg_ref, bg_ref,
         o_ref) = refs

    R, E = x_ref.shape                      # R = TB * S flattened rows
    Dg = wg_ref.shape[1]
    TB = R // seq_len

    # f32 rows from HBM, cast to bf16 in-kernel (single HBM pass of seqs).
    xb = x_ref[...].astype(jnp.bfloat16)                      # [R, 128] bf16

    # Two dots sharing the same LHS (no column-slicing of a fused result).
    h_pre = jnp.dot(xb, w1_ref[...],
                    preferred_element_type=jnp.float32) + b1_ref[...]
    h1 = jnp.tanh(h_pre.astype(jnp.bfloat16))                 # bf16 tanh (EUP)
    t = jnp.dot(xb, wt_ref[...],
                preferred_element_type=jnp.float32) + bt_ref[...]   # [R, 64] f32
    gates = jnp.dot(h1, wg_ref[...],
                    preferred_element_type=jnp.float32) + bg_ref[...]  # [R, 64]

    if mask_mode == _MASK_BATCHED:
        gates = gates + mask_ref[...]
    elif mask_mode == _MASK_SHARED:
        gates = (gates.reshape(TB, seq_len, Dg) + mask_ref[...]).reshape(R, Dg)

    # softmax over the 64 gate slots (f32); division moved onto the EUP.
    m = jnp.max(gates, axis=-1, keepdims=True)
    e = jnp.exp(gates - m)
    p_attn = e * pl.reciprocal(jnp.sum(e, axis=-1, keepdims=True), approx=True)

    # weighted sum over the sequence axis
    weighted = (t * p_attn).reshape(TB, seq_len, Dg)
    o_ref[...] = jnp.sum(weighted, axis=1).astype(o_ref.dtype)      # [TB, 64]


def _hw_defaults():
    """Per-generation x-block byte target and scoped-VMEM limit."""
    try:
        cap = int(pltpu.get_tpu_info().vmem_capacity_bytes)
    except Exception:
        cap = 64 << 20
    target = (4 << 20) if cap >= (100 << 20) else (2 << 20)   # v5e/v6e vs v7x
    limit = min(cap * 3 // 4, 96 << 20)
    return target, limit


def _pick_block_b(B, S, E, target_bytes):
    """Batch rows per block.  TB is either == B or a multiple of 8 (keeps the
    [TB,64] output block and [TB*S,128] input block sublane-aligned).  Ensures
    >= 2 grid steps for non-tiny B (v7x two-core sharding + DMA pipelining)."""
    if B < 16:
        return B
    row_bytes = S * E * 4                              # f32 bytes per batch row
    tb = max(8, int(target_bytes) // max(row_bytes, 1))
    tb = min(tb, max(8, (B // 2) // 8 * 8))            # at least 2 grid steps
    tb = max(8, (tb // 8) * 8)
    for cand in range(tb, 7, -8):                      # prefer no ragged tail
        if B % cand == 0:
            return cand
    return tb                                          # ragged tail handled by Pallas


def _prep_mask(seq_masks, B, S, Dg):
    if seq_masks is None:
        return _MASK_NONE, None
    m = jnp.asarray(seq_masks, dtype=jnp.float32)
    if m.ndim == 3 and m.shape[0] != 1:
        # genuinely per-(batch, position): flatten rows, read f32 per block
        m = jnp.broadcast_to(m, (B, S, Dg)).reshape(B * S, Dg)
        return _MASK_BATCHED, m
    if m.ndim == 3:
        m = m[0]
    return _MASK_SHARED, jnp.broadcast_to(m, (S, Dg))   # tiny resident block


def self_attend(seqs, params, seq_masks=None, *, block_b=None):
    """seqs: [B, S, 128] float32.  seq_masks: None or an additive mask
    broadcastable to [B, S, 64] (added to the gates, as in the PyTorch module)."""
    B, S, E = seqs.shape
    w1, b1 = params["w1"], params["b1"]            # torch layout: [out, in], [out]
    wg, bg = params["wg"], params["bg"]
    wt, bt = params["wt"], params["bt"]
    Dg = wg.shape[0]
    if E != w1.shape[1]:
        raise ValueError(f"embedding dim {E} != Linear in_features {w1.shape[1]}")

    target_bytes, vmem_limit = _hw_defaults()
    TB = block_b if block_b is not None else _pick_block_b(B, S, E, target_bytes)
    nb = pl.cdiv(B, TB)

    # Free row-major flatten; no dtype cast, no pad (extra HBM passes removed).
    x2 = seqs.reshape(B * S, E)
    mask_mode, mask_arr = _prep_mask(seq_masks, B, S, Dg)

    # Small resident weights: bf16 for MXU operands, f32 biases.
    w1_t = w1.T.astype(jnp.bfloat16)                   # [128, 128]
    wt_t = wt.T.astype(jnp.bfloat16)                   # [128, 64]
    wg_t = wg.T.astype(jnp.bfloat16)                   # [128, 64]
    b1_r = b1.reshape(1, -1).astype(jnp.float32)
    bt_r = bt.reshape(1, -1).astype(jnp.float32)
    bg_r = bg.reshape(1, -1).astype(jnp.float32)

    args = [x2]
    in_specs = [pl.BlockSpec((TB * S, E), lambda b: (b, 0))]
    if mask_mode == _MASK_BATCHED:
        args.append(mask_arr)
        in_specs.append(pl.BlockSpec((TB * S, Dg), lambda b: (b, 0)))
    elif mask_mode == _MASK_SHARED:
        args.append(mask_arr)
        in_specs.append(pl.BlockSpec((S, Dg), lambda b: (0, 0)))
    args += [w1_t, b1_r, wt_t, bt_r, wg_t, bg_r]
    in_specs += [
        pl.BlockSpec((E, E), lambda b: (0, 0)),        # weights resident across grid
        pl.BlockSpec((1, E), lambda b: (0, 0)),
        pl.BlockSpec((E, Dg), lambda b: (0, 0)),
        pl.BlockSpec((1, Dg), lambda b: (0, 0)),
        pl.BlockSpec((E, Dg), lambda b: (0, 0)),
        pl.BlockSpec((1, Dg), lambda b: (0, 0)),
    ]

    mask_bytes = 0
    if mask_mode == _MASK_BATCHED:
        mask_bytes = B * S * Dg * 4
    elif mask_mode == _MASK_SHARED:
        mask_bytes = S * Dg * 4
    flops = 2 * B * S * E * (E + 2 * Dg)
    transc = B * S * (E + Dg + 1)                      # tanh + exp + reciprocal
    bytes_accessed = (B * S * E * 4                    # seqs (f32, single pass)
                      + (E * E + 2 * E * Dg) * 2       # bf16 weights
                      + (E + 2 * Dg) * 4               # biases
                      + B * Dg * 4                     # output
                      + mask_bytes)

    return pl.pallas_call(
        functools.partial(_self_attend_kernel, mask_mode=mask_mode, seq_len=S),
        out_shape=jax.ShapeDtypeStruct((B, Dg), jnp.float32),
        grid=(nb,),
        in_specs=in_specs,
        out_specs=pl.BlockSpec((TB, Dg), lambda b: (b, 0)),
        compiler_params=pltpu.CompilerParams(
            dimension_semantics=("parallel",),
            vmem_limit_bytes=vmem_limit),
        cost_estimate=pl.CostEstimate(flops=flops, transcendentals=transc,
                                      bytes_accessed=bytes_accessed),
    )(*args)


def _reference(seqs, params, seq_masks=None):
    """Pure-JAX f32 reference mirroring the PyTorch forward."""
    h1 = jnp.tanh(seqs @ params["w1"].T + params["b1"])
    gates = h1 @ params["wg"].T + params["bg"]
    if seq_masks is not None:
        gates = gates + seq_masks
    p_attn = jax.nn.softmax(gates, axis=-1)
    t = seqs @ params["wt"].T + params["bt"]
    return jnp.sum(t * p_attn, axis=1)


def _reference_mixed(seqs, params, seq_masks=None):
    """Reference mirroring the kernel's mixed precision (bf16 MXU operands,
    bf16 tanh, f32 accumulation / softmax)."""
    xb = seqs.astype(jnp.bfloat16)
    w1b = params["w1"].T.astype(jnp.bfloat16)
    wgb = params["wg"].T.astype(jnp.bfloat16)
    wtb = params["wt"].T.astype(jnp.bfloat16)
    h_pre = jnp.dot(xb, w1b, preferred_element_type=jnp.float32) + params["b1"]
    h1 = jnp.tanh(h_pre.astype(jnp.bfloat16))
    t = jnp.dot(xb, wtb, preferred_element_type=jnp.float32) + params["bt"]
    gates = jnp.dot(h1, wgb, preferred_element_type=jnp.float32) + params["bg"]
    if seq_masks is not None:
        gates = gates + seq_masks
    p_attn = jax.nn.softmax(gates, axis=-1)
    return jnp.sum(t * p_attn, axis=1)


def _init_params(key):
    """Deterministic synthetic init matching Linear(128,128), Linear(128,64) x2."""
    ks = jax.random.split(key, 6)

    def lin(kw, kb, out_f, in_f):
        bound = 1.0 / jnp.sqrt(in_f)
        w = jax.random.uniform(kw, (out_f, in_f), jnp.float32, -bound, bound)
        b = jax.random.uniform(kb, (out_f,), jnp.float32, -bound, bound)
        return w, b

    w1, b1 = lin(ks[0], ks[1], 128, 128)
    wg, bg = lin(ks[2], ks[3], 64, 128)
    wt, bt = lin(ks[4], ks[5], 64, 128)
    return {"w1": w1, "b1": b1, "wg": wg, "bg": bg, "wt": wt, "bt": bt}


if __name__ == "__main__":
    key = jax.random.PRNGKey(0)
    k_param, k_x = jax.random.split(key)

    B, S, E, Dg = 2, 8, 128, 64   # embedding_size is hard-coded to 128 by the module
    params = _init_params(k_param)
    seqs = jax.random.normal(k_x, (B, S, E), jnp.float32)

    # no-mask variant
    out = jax.block_until_ready(self_attend(seqs, params, seq_masks=None))
    assert out.shape == (B, Dg), out.shape
    assert bool(jnp.all(jnp.isfinite(out))), "non-finite output"
    ref_mixed = _reference_mixed(seqs, params, None)
    ref_f32 = _reference(seqs, params, None)
    assert jnp.allclose(out, ref_mixed, atol=1e-2, rtol=1e-2), "mismatch vs mixed ref"
    assert jnp.allclose(out, ref_f32, atol=3e-2, rtol=3e-2), "mismatch vs f32 ref"

    # batch-invariant additive mask (resident [S,64] path)
    shared_mask = jnp.where(jnp.arange(Dg) < 48, 0.0, -1e9).astype(jnp.float32)
    shared_mask = jnp.broadcast_to(shared_mask, (S, Dg))
    out_s = jax.block_until_ready(self_attend(seqs, params, seq_masks=shared_mask))
    ref_s = _reference_mixed(seqs, params, shared_mask)
    assert out_s.shape == (B, Dg), out_s.shape
    assert jnp.allclose(out_s, ref_s, atol=1e-2, rtol=1e-2), "shared-mask mismatch"

    # per-(batch, position) additive mask (tiled [TB*S,64] path)
    bmask = jnp.where(jax.random.uniform(jax.random.PRNGKey(7), (B, S, Dg)) < 0.2,
                      -1e9, 0.0).astype(jnp.float32)
    out_b = jax.block_until_ready(self_attend(seqs, params, seq_masks=bmask))
    ref_b = _reference_mixed(seqs, params, bmask)
    assert out_b.shape == (B, Dg), out_b.shape
    assert jnp.allclose(out_b, ref_b, atol=1e-2, rtol=1e-2), "batched-mask mismatch"

    print("KERNEL_OK")
</pallas_src>

<mosaic_0001>
module attributes {stable_mosaic.version = 11 : i64} {
  func.func @_self_attend_kernel(%arg0: i32, %arg1: memref<16x128xf32, #tpu.memory_space<vmem>>, %arg2: memref<128x128xbf16, #tpu.memory_space<vmem>>, %arg3: memref<1x128xf32, #tpu.memory_space<vmem>>, %arg4: memref<128x64xbf16, #tpu.memory_space<vmem>>, %arg5: memref<1x64xf32, #tpu.memory_space<vmem>>, %arg6: memref<128x64xbf16, #tpu.memory_space<vmem>>, %arg7: memref<1x64xf32, #tpu.memory_space<vmem>>, %arg8: memref<2x64xf32, #tpu.memory_space<vmem>>) attributes {dimension_semantics = [#tpu.dimension_semantics<parallel>], iteration_bounds = array<i64: 1>, scalar_prefetch = 0 : i64, scratch_operands = 0 : i64, tpu.core_type = #tpu.core_type<tc>, window_params = [{transform_indices = @transform_0, window_bounds = array<i64: 16, 128>}, {pipeline_mode = #tpu.pipeline_mode<synchronous>, transform_indices = @transform_1, window_bounds = array<i64: 128, 128>}, {pipeline_mode = #tpu.pipeline_mode<synchronous>, transform_indices = @transform_2, window_bounds = array<i64: 1, 128>}, {pipeline_mode = #tpu.pipeline_mode<synchronous>, transform_indices = @transform_3, window_bounds = array<i64: 128, 64>}, {pipeline_mode = #tpu.pipeline_mode<synchronous>, transform_indices = @transform_4, window_bounds = array<i64: 1, 64>}, {pipeline_mode = #tpu.pipeline_mode<synchronous>, transform_indices = @transform_5, window_bounds = array<i64: 128, 64>}, {pipeline_mode = #tpu.pipeline_mode<synchronous>, transform_indices = @transform_6, window_bounds = array<i64: 1, 64>}, {transform_indices = @transform_7, window_bounds = array<i64: 2, 64>}]} {
    %c0 = arith.constant 0 : index
    %c0_0 = arith.constant 0 : index
    %0 = vector.load %arg1[%c0, %c0_0] : memref<16x128xf32, #tpu.memory_space<vmem>>, vector<16x128xf32>
    %1 = arith.truncf %0 : vector<16x128xf32> to vector<16x128xbf16>
    %c0_1 = arith.constant 0 : index
    %c0_2 = arith.constant 0 : index
    %2 = vector.load %arg2[%c0_1, %c0_2] : memref<128x128xbf16, #tpu.memory_space<vmem>>, vector<128x128xbf16>
    %cst = arith.constant dense<0.000000e+00> : vector<16x128xf32>
    %3 = tpu.matmul %1, %2, %cst {dimension_numbers = #tpu.dot_dimension_numbers<[1], [0], [0], [1], [0, 0, 1, 1], [], []>} : vector<16x128xbf16>, vector<128x128xbf16>, vector<16x128xf32> -> vector<16x128xf32>
    %c0_3 = arith.constant 0 : index
    %c0_4 = arith.constant 0 : index
    %4 = vector.load %arg3[%c0_3, %c0_4] : memref<1x128xf32, #tpu.memory_space<vmem>>, vector<1x128xf32>
    %5 = vector.broadcast %4 : vector<1x128xf32> to vector<16x128xf32>
    %6 = arith.addf %3, %5 : vector<16x128xf32>
    %7 = arith.truncf %6 : vector<16x128xf32> to vector<16x128xbf16>
    %8 = math.tanh %7 : vector<16x128xbf16>
    %c0_5 = arith.constant 0 : index
    %c0_6 = arith.constant 0 : index
    %9 = vector.load %arg4[%c0_5, %c0_6] : memref<128x64xbf16, #tpu.memory_space<vmem>>, vector<128x64xbf16>
    %cst_7 = arith.constant dense<0.000000e+00> : vector<16x64xf32>
    %10 = tpu.matmul %1, %9, %cst_7 {dimension_numbers = #tpu.dot_dimension_numbers<[1], [0], [0], [1], [0, 0, 1, 1], [], []>} : vector<16x128xbf16>, vector<128x64xbf16>, vector<16x64xf32> -> vector<16x64xf32>
    %c0_8 = arith.constant 0 : index
    %c0_9 = arith.constant 0 : index
    %11 = vector.load %arg5[%c0_8, %c0_9] : memref<1x64xf32, #tpu.memory_space<vmem>>, vector<1x64xf32>
    %12 = vector.broadcast %11 : vector<1x64xf32> to vector<16x64xf32>
    %13 = arith.addf %10, %12 : vector<16x64xf32>
    %c0_10 = arith.constant 0 : index
    %c0_11 = arith.constant 0 : index
    %14 = vector.load %arg6[%c0_10, %c0_11] : memref<128x64xbf16, #tpu.memory_space<vmem>>, vector<128x64xbf16>
    %cst_12 = arith.constant dense<0.000000e+00> : vector<16x64xf32>
    %15 = tpu.matmul %8, %14, %cst_12 {dimension_numbers = #tpu.dot_dimension_numbers<[1], [0], [0], [1], [0, 0, 1, 1], [], []>} : vector<16x128xbf16>, vector<128x64xbf16>, vector<16x64xf32> -> vector<16x64xf32>
    %c0_13 = arith.constant 0 : index
    %c0_14 = arith.constant 0 : index
    %16 = vector.load %arg7[%c0_13, %c0_14] : memref<1x64xf32, #tpu.memory_space<vmem>>, vector<1x64xf32>
    %17 = vector.broadcast %16 : vector<1x64xf32> to vector<16x64xf32>
    %18 = arith.addf %15, %17 : vector<16x64xf32>
    %cst_15 = arith.constant dense<0xFF800000> : vector<16xf32>
    %19 = vector.multi_reduction <maximumf>, %18, %cst_15 [1] : vector<16x64xf32> to vector<16xf32>
    %20 = vector.shape_cast %19 : vector<16xf32> to vector<16x1xf32>
    %21 = vector.broadcast %20 : vector<16x1xf32> to vector<16x64xf32>
    %22 = arith.subf %18, %21 : vector<16x64xf32>
    %23 = math.exp %22 : vector<16x64xf32>
    %cst_16 = arith.constant dense<0.000000e+00> : vector<16xf32>
    %24 = vector.multi_reduction <add>, %23, %cst_16 [1] : vector<16x64xf32> to vector<16xf32>
    %25 = vector.shape_cast %24 : vector<16xf32> to vector<16x1xf32>
    %26 = tpu.reciprocal %25 {approx = true} : vector<16x1xf32> -> vector<16x1xf32>
    %27 = vector.broadcast %26 : vector<16x1xf32> to vector<16x64xf32>
    %28 = arith.mulf %23, %27 : vector<16x64xf32>
    %29 = arith.mulf %13, %28 : vector<16x64xf32>
    %30 = vector.shape_cast %29 : vector<16x64xf32> to vector<2x8x64xf32>
    %cst_17 = arith.constant dense<0.000000e+00> : vector<2x64xf32>
    %31 = vector.multi_reduction <add>, %30, %cst_17 [1] : vector<2x8x64xf32> to vector<2x64xf32>
    %c0_18 = arith.constant 0 : index
    %c0_19 = arith.constant 0 : index
    %32 = vector.load %arg8[%c0_18, %c0_19] : memref<2x64xf32, #tpu.memory_space<vmem>>, vector<2x64xf32>
    tpu.vector_store %arg8[%c0_18, %c0_19], %31 {strides = array<i32>} : memref<2x64xf32, #tpu.memory_space<vmem>>, vector<2x64xf32>,
    return
  }
  func.func @transform_0(%arg0: i32) -> (i32, i32) {
    %c0_i32 = arith.constant 0 : i32
    %c0_i32_0 = arith.constant 0 : i32
    return %arg0, %c0_i32 : i32, i32
  }
  func.func @transform_1(%arg0: i32) -> (i32, i32) {
    %c0_i32 = arith.constant 0 : i32
    %c0_i32_0 = arith.constant 0 : i32
    %c0_i32_1 = arith.constant 0 : i32
    return %c0_i32, %c0_i32_0 : i32, i32
  }
  func.func @transform_2(%arg0: i32) -> (i32, i32) {
    %c0_i32 = arith.constant 0 : i32
    %c0_i32_0 = arith.constant 0 : i32
    %c0_i32_1 = arith.constant 0 : i32
    return %c0_i32, %c0_i32_0 : i32, i32
  }
  func.func @transform_3(%arg0: i32) -> (i32, i32) {
    %c0_i32 = arith.constant 0 : i32
    %c0_i32_0 = arith.constant 0 : i32
    %c0_i32_1 = arith.constant 0 : i32
    return %c0_i32, %c0_i32_0 : i32, i32
  }
  func.func @transform_4(%arg0: i32) -> (i32, i32) {
    %c0_i32 = arith.constant 0 : i32
    %c0_i32_0 = arith.constant 0 : i32
    %c0_i32_1 = arith.constant 0 : i32
    return %c0_i32, %c0_i32_0 : i32, i32
  }
  func.func @transform_5(%arg0: i32) -> (i32, i32) {
    %c0_i32 = arith.constant 0 : i32
    %c0_i32_0 = arith.constant 0 : i32
    %c0_i32_1 = arith.constant 0 : i32
    return %c0_i32, %c0_i32_0 : i32, i32
  }
  func.func @transform_6(%arg0: i32) -> (i32, i32) {
    %c0_i32 = arith.constant 0 : i32
    %c0_i32_0 = arith.constant 0 : i32
    %c0_i32_1 = arith.constant 0 : i32
    return %c0_i32, %c0_i32_0 : i32, i32
  }
  func.func @transform_7(%arg0: i32) -> (i32, i32) {
    %c0_i32 = arith.constant 0 : i32
    %c0_i32_0 = arith.constant 0 : i32
    return %arg0, %c0_i32 : i32, i32
  }
}

</mosaic_0001>

<llo_original>
// kernel: tpu_custom_call.1
$region0: #{tpu_custom_call.1}
  #allocation0 [shape = 'u32[]', space=smem, size = 0x4, offset = 0x4, fixed_abs, tag = 'smem constant byte address 0x4 - core index']
  #allocation1 [shape = 'u32[144,128]{1,0:T(1,128)}', space=vmem, size = 0x12000, scoped, tag = 'internal scratch']
  %s0 = inlined_call_operand.vmem [shape: f32[16,128], index: 0, kind: input, shape index: {}]
  %s1 = inlined_call_operand.vmem [shape: bf16[128,128], index: 1, kind: input, shape index: {}]
  %s2 = inlined_call_operand.vmem [shape: f32[1,128], index: 2, kind: input, shape index: {}]
  %s3 = inlined_call_operand.vmem [shape: bf16[128,64], index: 3, kind: input, shape index: {}]
  %s4 = inlined_call_operand.vmem [shape: f32[1,64], index: 4, kind: input, shape index: {}]
  %s5 = inlined_call_operand.vmem [shape: bf16[128,64], index: 5, kind: input, shape index: {}]
  %s6 = inlined_call_operand.vmem [shape: f32[1,64], index: 6, kind: input, shape index: {}]
  %s7 = inlined_call_operand.hbm [shape: f32[2,64], index: 7, kind: output, shape index: {}]
  %s8 = sld [smem:[#allocation0]]
  $region38: #{tpu_custom_call.1} parent=0
    _
  %s10 = ssub.s32 1, %s8
  %s11 = scalar_select 0, %s10, %s8
  $region1: #{tpu_custom_call.1} parent=0
    #allocation2 [shape = 'u8[1024]{0}', space=vmem, size = 0x400, scoped, tag = 'output window, operand 0, single buffered']
    #allocation3 [shape = 's32[1]{0}', space=sflag, size = 0x4, scoped, tag = 'scoped memory for tpu_custom_call.1']
    %12 = vsyncpa [#allocation3], 0
    // Predicated region
    $region2: #{tpu_custom_call.1} parent=1 // pred_check
      _
    $region3: #{tpu_custom_call.1} parent=1 // pred_check_branch
      %14 = sbr.rel (0) target = $region5
    $region4: #{tpu_custom_call.1} parent=1 // pred_region
      _
    $region5: #{tpu_custom_call.1} parent=1 // pred_fallthru
      _
    // Predicated region
    $region6: #{tpu_custom_call.1} parent=1 // pred_check
      _
    $region7: #{tpu_custom_call.1} parent=1 // pred_check_branch
      %16 = sbr.rel (0) target = $region9
    $region8: #{tpu_custom_call.1} parent=1 // pred_region
      _
    $region9: #{tpu_custom_call.1} parent=1 // pred_fallthru
      _
    // Predicated region
    $region10: #{tpu_custom_call.1} parent=1 // pred_check
      _
    $region11: #{tpu_custom_call.1} parent=1 // pred_check_branch
      %18 = sbr.rel (0) target = $region13
    $region12: #{tpu_custom_call.1} parent=1 // pred_region
      _
    $region13: #{tpu_custom_call.1} parent=1 // pred_fallthru
      _
    // Predicated region
    $region14: #{tpu_custom_call.1} parent=1 // pred_check
      _
    $region15: #{tpu_custom_call.1} parent=1 // pred_check_branch
      %20 = sbr.rel (0) target = $region17
    $region16: #{tpu_custom_call.1} parent=1 // pred_region
      _
    $region17: #{tpu_custom_call.1} parent=1 // pred_fallthru
      _
    // Predicated region
    $region18: #{tpu_custom_call.1} parent=1 // pred_check
      _
    $region19: #{tpu_custom_call.1} parent=1 // pred_check_branch
      %22 = sbr.rel (0) target = $region21
    $region20: #{tpu_custom_call.1} parent=1 // pred_region
      _
    $region21: #{tpu_custom_call.1} parent=1 // pred_fallthru
      _
    // Predicated region
    $region22: #{tpu_custom_call.1} parent=1 // pred_check
      _
    $region23: #{tpu_custom_call.1} parent=1 // pred_check_branch
      %24 = sbr.rel (0) target = $region25
    $region24: #{tpu_custom_call.1} parent=1 // pred_region
      _
    $region25: #{tpu_custom_call.1} parent=1 // pred_fallthru
      _
    // Predicated region
    $region26: #{tpu_custom_call.1} parent=1 // pred_check
      _
    $region27: #{tpu_custom_call.1} parent=1 // pred_check_branch
      %26 = sbr.rel (0) target = $region29
    $region28: #{tpu_custom_call.1} parent=1 // pred_region
      _
    $region29: #{tpu_custom_call.1} parent=1 // pred_fallthru
      _
    %v28 = vld [vmem:[%s0] sm:$0xff]
    %v29 = vld [vmem:[%s0 + $0x8] sm:$0xff]
    %v30 = vpack.c.bf16 %v29, %v28
    %v31 = vld [vmem:[%s1] sm:$0xf]
    %v32 = vld [vmem:[%s1 + $0x4] sm:$0xf]
    %v33 = vld [vmem:[%s1 + $0x8] sm:$0xf]
    %v34 = vld [vmem:[%s1 + $0xc] sm:$0xf]
    %v35 = vld [vmem:[%s1 + $0x10] sm:$0xf]
    %v36 = vld [vmem:[%s1 + $0x14] sm:$0xf]
    %v37 = vld [vmem:[%s1 + $0x18] sm:$0xf]
    %v38 = vld [vmem:[%s1 + $0x1c] sm:$0xf]
    %v39 = vld [vmem:[%s1 + $0x20] sm:$0xf]
    %v40 = vld [vmem:[%s1 + $0x24] sm:$0xf]
    %v41 = vld [vmem:[%s1 + $0x28] sm:$0xf]
    %v42 = vld [vmem:[%s1 + $0x2c] sm:$0xf]
    %v43 = vld [vmem:[%s1 + $0x30] sm:$0xf]
    %v44 = vld [vmem:[%s1 + $0x34] sm:$0xf]
    %v45 = vld [vmem:[%s1 + $0x38] sm:$0xf]
    %v46 = vld [vmem:[%s1 + $0x3c] sm:$0xf]
    %v47 = vld [vmem:[%s2] sm:$0x1]
    %v49 = vlaneseq
    %v50 = vshrl.u32 %v49, 7
    %v51 = vsub.s32 0, %v50
    %v52 = vrot.slane %v47, %v51
    %v70 = vunpack.c.l.b16 %v31
    %v71 = vunpack.c.l.b16 %v32
    %v72 = vunpack.c.l.b16 %v33
    %v73 = vunpack.c.l.b16 %v34
    %v74 = vunpack.c.l.b16 %v35
    %v75 = vunpack.c.l.b16 %v36
    %v76 = vunpack.c.l.b16 %v37
    %v77 = vunpack.c.l.b16 %v38
    %v78 = vunpack.c.l.b16 %v39
    %v79 = vunpack.c.l.b16 %v40
    %v80 = vunpack.c.l.b16 %v41
    %v81 = vunpack.c.l.b16 %v42
    %v82 = vunpack.c.l.b16 %v43
    %v83 = vunpack.c.l.b16 %v44
    %v84 = vunpack.c.l.b16 %v45
    %v85 = vunpack.c.l.b16 %v46
    %v86 = vpack.c.b16 %v71, %v70
    %v87 = vpack.c.b16 %v73, %v72
    %v88 = vpack.c.b16 %v75, %v74
    %v89 = vpack.c.b16 %v77, %v76
    %v90 = vpack.c.b16 %v79, %v78
    %v91 = vpack.c.b16 %v81, %v80
    %v92 = vpack.c.b16 %v83, %v82
    %v93 = vpack.c.b16 %v85, %v84
    %102 = vmatprep.subr.bf16.mxu0 0
    %103 = vmatpush1.bf16.msra.mxu0 %v93
    %104 = vmatprep.subr.bf16.mxu0 0
    %105 = vmatpush1.bf16.msra.mxu0 %v92
    %106 = vmatprep.subr.bf16.mxu0 0
    %107 = vmatpush1.bf16.msra.mxu0 %v91
    %108 = vmatprep.subr.bf16.mxu0 0
    %109 = vmatpush1.bf16.msra.mxu0 %v90
    %110 = vmatprep.subr.bf16.mxu0 0
    %111 = vmatpush1.bf16.msra.mxu0 %v89
    %112 = vmatprep.subr.bf16.mxu0 0
    %113 = vmatpush1.bf16.msra.mxu0 %v88
    %114 = vmatprep.subr.bf16.mxu0 0
    %115 = vmatpush1.bf16.msra.mxu0 %v87
    %116 = vmatprep.subr.bf16.mxu0 0
    %117 = vmatpush1.bf16.msra.mxu0 %v86
    %118 = vmatprep.subr.bf16.mxu0 0
    %119 = vmatpush2.bf16.msra.mxu0 0
    %120 = vmatprep.subr.bf16.mxu0 0
    %121 = vmatpush2.bf16.msra.mxu0 0
    %122 = vmatprep.subr.bf16.mxu0 0
    %123 = vmatpush2.bf16.msra.mxu0 0
    %124 = vmatprep.subr.bf16.mxu0 0
    %125 = vmatpush2.bf16.msra.mxu0 0
    %126 = vmatprep.subr.bf16.mxu0 0
    %127 = vmatpush2.bf16.msra.mxu0 0
    %128 = vmatprep.subr.bf16.mxu0 0
    %129 = vmatpush2.bf16.msra.mxu0 0
    %130 = vmatprep.subr.bf16.mxu0 0
    %131 = vmatpush2.bf16.msra.mxu0 0
    %132 = vmatprep.subr.bf16.mxu0 0
    %133 = vmatpush2.bf16.msra.mxu0 0
    %134 = vmatprep.mubr.bf16.mxu0 0
    %135 = vmatmul.mubr.bf16.gmra.mxu0 %v30
    %v136 = vpop.f32.mrf.mxu0
    %v137 = vadd.f32 %v52, %v136
    %v138 = vpop.f32.mrf.mxu0
    %v139 = vpop.f32.mrf.mxu0
    %v140 = vadd.f32 %v52, %v139
    %v141 = vpop.f32.mrf.mxu0
    %142 = vdwg.mxu0
    %v143 = vpack.c.bf16 %v140, %v137
    %v144 = vtanh.bf16.pop %v143
    %v145 = vld [vmem:[%s3] sm:$0xf]
    %v146 = vld [vmem:[%s3 + $0x4] sm:$0xf]
    %v147 = vld [vmem:[%s3 + $0x8] sm:$0xf]
    %v148 = vld [vmem:[%s3 + $0xc] sm:$0xf]
    %v149 = vld [vmem:[%s3 + $0x10] sm:$0xf]
    %v150 = vld [vmem:[%s3 + $0x14] sm:$0xf]
    %v151 = vld [vmem:[%s3 + $0x18] sm:$0xf]
    %v152 = vld [vmem:[%s3 + $0x1c] sm:$0xf]
    %v153 = vld [vmem:[%s3 + $0x20] sm:$0xf]
    %v154 = vld [vmem:[%s3 + $0x24] sm:$0xf]
    %v155 = vld [vmem:[%s3 + $0x28] sm:$0xf]
    %v156 = vld [vmem:[%s3 + $0x2c] sm:$0xf]
    %v157 = vld [vmem:[%s3 + $0x30] sm:$0xf]
    %v158 = vld [vmem:[%s3 + $0x34] sm:$0xf]
    %v159 = vld [vmem:[%s3 + $0x38] sm:$0xf]
    %v160 = vld [vmem:[%s3 + $0x3c] sm:$0xf]
    %v161 = vld [vmem:[%s4] sm:$0x1]
    %v163 = vlaneseq
    %v164 = vshrl.u32 %v163, 7
    %v165 = vsub.s32 0, %v164
    %v166 = vrot.slane %v161, %v165
    %v184 = vunpack.c.l.b16 %v145
    %v185 = vunpack.c.l.b16 %v146
    %v186 = vunpack.c.l.b16 %v147
    %v187 = vunpack.c.l.b16 %v148
    %v188 = vunpack.c.l.b16 %v149
    %v189 = vunpack.c.l.b16 %v150
    %v190 = vunpack.c.l.b16 %v151
    %v191 = vunpack.c.l.b16 %v152
    %v192 = vunpack.c.l.b16 %v153
    %v193 = vunpack.c.l.b16 %v154
    %v194 = vunpack.c.l.b16 %v155
    %v195 = vunpack.c.l.b16 %v156
    %v196 = vunpack.c.l.b16 %v157
    %v197 = vunpack.c.l.b16 %v158
    %v198 = vunpack.c.l.b16 %v159
    %v199 = vunpack.c.l.b16 %v160
    %v200 = vpack.c.b16 %v185, %v184
    %v201 = vpack.c.b16 %v187, %v186
    %v202 = vpack.c.b16 %v189, %v188
    %v203 = vpack.c.b16 %v191, %v190
    %v204 = vpack.c.b16 %v193, %v192
    %v205 = vpack.c.b16 %v195, %v194
    %v206 = vpack.c.b16 %v197, %v196
    %v207 = vpack.c.b16 %v199, %v198
    %216 = vmatprep.subr.bf16.mxu0 0
    %217 = vmatpush1.bf16.msra.mxu0 %v207
    %218 = vmatprep.subr.bf16.mxu0 0
    %219 = vmatpush1.bf16.msra.mxu0 %v206
    %220 = vmatprep.subr.bf16.mxu0 0
    %221 = vmatpush1.bf16.msra.mxu0 %v205
    %222 = vmatprep.subr.bf16.mxu0 0
    %223 = vmatpush1.bf16.msra.mxu0 %v204
    %224 = vmatprep.subr.bf16.mxu0 0
    %225 = vmatpush1.bf16.msra.mxu0 %v203
    %226 = vmatprep.subr.bf16.mxu0 0
    %227 = vmatpush1.bf16.msra.mxu0 %v202
    %228 = vmatprep.subr.bf16.mxu0 0
    %229 = vmatpush1.bf16.msra.mxu0 %v201
    %230 = vmatprep.subr.bf16.mxu0 0
    %231 = vmatpush1.bf16.msra.mxu0 %v200
    %232 = vmatprep.subr.bf16.mxu0 0
    %233 = vmatpush2.bf16.msra.mxu0 0
    %234 = vmatprep.subr.bf16.mxu0 0
    %235 = vmatpush2.bf16.msra.mxu0 0
    %236 = vmatprep.subr.bf16.mxu0 0
    %237 = vmatpush2.bf16.msra.mxu0 0
    %238 = vmatprep.subr.bf16.mxu0 0
    %239 = vmatpush2.bf16.msra.mxu0 0
    %240 = vmatprep.subr.bf16.mxu0 0
    %241 = vmatpush2.bf16.msra.mxu0 0
    %242 = vmatprep.subr.bf16.mxu0 0
    %243 = vmatpush2.bf16.msra.mxu0 0
    %244 = vmatprep.subr.bf16.mxu0 0
    %245 = vmatpush2.bf16.msra.mxu0 0
    %246 = vmatprep.subr.bf16.mxu0 0
    %247 = vmatpush2.bf16.msra.mxu0 0
    %248 = vmatprep.mubr.bf16.mxu0 0
    %249 = vmatmul.mubr.bf16.gmra.mxu0 %v30
    %v250 = vpop.f32.mrf.mxu0
    %v251 = vadd.f32 %v166, %v250
    %v252 = vpop.f32.mrf.mxu0
    %v253 = vpop.f32.mrf.mxu0
    %v254 = vadd.f32 %v166, %v253
    %v255 = vpop.f32.mrf.mxu0
    %256 = vdwg.mxu0
    %v257 = vld [vmem:[%s5] sm:$0xf]
    %v258 = vld [vmem:[%s5 + $0x4] sm:$0xf]
    %v259 = vld [vmem:[%s5 + $0x8] sm:$0xf]
    %v260 = vld [vmem:[%s5 + $0xc] sm:$0xf]
    %v261 = vld [vmem:[%s5 + $0x10] sm:$0xf]
    %v262 = vld [vmem:[%s5 + $0x14] sm:$0xf]
    %v263 = vld [vmem:[%s5 + $0x18] sm:$0xf]
    %v264 = vld [vmem:[%s5 + $0x1c] sm:$0xf]
    %v265 = vld [vmem:[%s5 + $0x20] sm:$0xf]
    %v266 = vld [vmem:[%s5 + $0x24] sm:$0xf]
    %v267 = vld [vmem:[%s5 + $0x28] sm:$0xf]
    %v268 = vld [vmem:[%s5 + $0x2c] sm:$0xf]
    %v269 = vld [vmem:[%s5 + $0x30] sm:$0xf]
    %v270 = vld [vmem:[%s5 + $0x34] sm:$0xf]
    %v271 = vld [vmem:[%s5 + $0x38] sm:$0xf]
    %v272 = vld [vmem:[%s5 + $0x3c] sm:$0xf]
    %v273 = vld [vmem:[%s6] sm:$0x1]
    %v275 = vlaneseq
    %v276 = vshrl.u32 %v275, 7
    %v277 = vsub.s32 0, %v276
    %v278 = vrot.slane %v273, %v277
    %v296 = vunpack.c.l.b16 %v257
    %v297 = vunpack.c.l.b16 %v258
    %v298 = vunpack.c.l.b16 %v259
    %v299 = vunpack.c.l.b16 %v260
    %v300 = vunpack.c.l.b16 %v261
    %v301 = vunpack.c.l.b16 %v262
    %v302 = vunpack.c.l.b16 %v263
    %v303 = vunpack.c.l.b16 %v264
    %v304 = vunpack.c.l.b16 %v265
    %v305 = vunpack.c.l.b16 %v266
    %v306 = vunpack.c.l.b16 %v267
    %v307 = vunpack.c.l.b16 %v268
    %v308 = vunpack.c.l.b16 %v269
    %v309 = vunpack.c.l.b16 %v270
    %v310 = vunpack.c.l.b16 %v271
    %v311 = vunpack.c.l.b16 %v272
    %v312 = vpack.c.b16 %v297, %v296
    %v313 = vpack.c.b16 %v299, %v298
    %v314 = vpack.c.b16 %v301, %v300
    %v315 = vpack.c.b16 %v303, %v302
    %v316 = vpack.c.b16 %v305, %v304
    %v317 = vpack.c.b16 %v307, %v306
    %v318 = vpack.c.b16 %v309, %v308
    %v319 = vpack.c.b16 %v311, %v310
    %328 = vmatprep.subr.bf16.mxu0 0
    %329 = vmatpush1.bf16.msra.mxu0 %v319
    %330 = vmatprep.subr.bf16.mxu0 0
    %331 = vmatpush1.bf16.msra.mxu0 %v318
    %332 = vmatprep.subr.bf16.mxu0 0
    %333 = vmatpush1.bf16.msra.mxu0 %v317
    %334 = vmatprep.subr.bf16.mxu0 0
    %335 = vmatpush1.bf16.msra.mxu0 %v316
    %336 = vmatprep.subr.bf16.mxu0 0
    %337 = vmatpush1.bf16.msra.mxu0 %v315
    %338 = vmatprep.subr.bf16.mxu0 0
    %339 = vmatpush1.bf16.msra.mxu0 %v314
    %340 = vmatprep.subr.bf16.mxu0 0
    %341 = vmatpush1.bf16.msra.mxu0 %v313
    %342 = vmatprep.subr.bf16.mxu0 0
    %343 = vmatpush1.bf16.msra.mxu0 %v312
    %344 = vmatprep.subr.bf16.mxu0 0
    %345 = vmatpush2.bf16.msra.mxu0 0
    %346 = vmatprep.subr.bf16.mxu0 0
    %347 = vmatpush2.bf16.msra.mxu0 0
    %348 = vmatprep.subr.bf16.mxu0 0
    %349 = vmatpush2.bf16.msra.mxu0 0
    %350 = vmatprep.subr.bf16.mxu0 0
    %351 = vmatpush2.bf16.msra.mxu0 0
    %352 = vmatprep.subr.bf16.mxu0 0
    %353 = vmatpush2.bf16.msra.mxu0 0
    %354 = vmatprep.subr.bf16.mxu0 0
    %355 = vmatpush2.bf16.msra.mxu0 0
    %356 = vmatprep.subr.bf16.mxu0 0
    %357 = vmatpush2.bf16.msra.mxu0 0
    %358 = vmatprep.subr.bf16.mxu0 0
    %359 = vmatpush2.bf16.msra.mxu0 0
    %360 = vmatprep.mubr.bf16.mxu0 0
    %361 = vmatmul.mubr.bf16.gmra.mxu0 %v144
    %v362 = vpop.f32.mrf.mxu0
    %v363 = vadd.f32 %v278, %v362
    %v364 = vpop.f32.mrf.mxu0
    %v365 = vpop.f32.mrf.mxu0
    %v366 = vadd.f32 %v278, %v365
    %v367 = vpop.f32.mrf.mxu0
    %368 = vdwg.mxu0
    %vm369 = vcmask 523264
    %v370 = vsel %vm369, %v363, -inf
    %371 = vmax.xlane.f32.xlu0 %v370
    %v372 = vpop.xlane.xlu0 %371
    %v373 = vsel %vm369, %v366, -inf
    %374 = vmax.xlane.f32.xlu0 %v373
    %v375 = vpop.xlane.xlu0 %374
    %v376 = vsub.f32 %v363, %v372
    %v377 = vsub.f32 %v366, %v375
    %v378 = vmul.f32 %v376, 1.442695
    %v379 = vpow.pop %v378
    %v380 = vmul.f32 %v377, 1.442695
    %v381 = vpow.pop %v380
    %v382 = vsel %vm369, %v379, 0.0
    %383 = vadd.xlane.f32.xlu0 %v382
    %v384 = vpop.xlane.xlu0 %383
    %v385 = vsel %vm369, %v381, 0.0
    %386 = vadd.xlane.f32.xlu0 %v385
    %v387 = vpop.xlane.xlu0 %386
    %v388 = vrcp.pop %v384
    %v389 = vrcp.pop %v387
    %v390 = vmul.f32 %v379, %v388
    %v391 = vmul.f32 %v381, %v389
    %v392 = vmul.f32 %v251, %v390
    %v393 = vmul.f32 %v254, %v391
    %v394 = vsel %vm369, %v392, 0.0
    %v395 = vrot.slane %v394, 4
    %v396 = vadd.f32 %v394, %v395
    %v397 = vrot.slane %v396, 2
    %v398 = vadd.f32 %v396, %v397
    %v399 = vrot.slane %v398, 1
    %v400 = vadd.f32 %v398, %v399
    %v401 = vsel %vm369, %v393, 0.0
    %v402 = vrot.slane %v401, 4
    %v403 = vadd.f32 %v401, %v402
    %v404 = vrot.slane %v403, 2
    %v405 = vadd.f32 %v403, %v404
    %v406 = vrot.slane %v405, 1
    %v407 = vadd.f32 %v405, %v406
    %vm410 = vcmask 1041409
    %v411 = vsel %vm410, %v407, %v400
    %vm413 = vcmask 517120
    %414 = vst.msk [vmem:[#allocation2] sm:$0x3] %vm413, %v411
    // Predicated region
    $region30: #{tpu_custom_call.1} parent=1 // pred_check
      _
    $region31: #{tpu_custom_call.1} parent=1 // pred_check_branch
      %416 = sbr.rel (0) target = $region33
    $region32: #{tpu_custom_call.1} parent=1 // pred_region
      %s418 = ssub.s32 32, 32
      %419 = vsyncadd [#allocation3], %s418
      %s421 = sshll.u32 [#allocation2], 4
      %s422 = int_to_ptr.vmem [resolvable:$true] %s421
      %424 = dma.vmem_to_hbm [thread:$0]  %s422, 32, %s7, [#allocation3]
    $region33: #{tpu_custom_call.1} parent=1 // pred_fallthru
      _
    // Predicated region
    $region34: #{tpu_custom_call.1} parent=1 // pred_check
      _
    $region35: #{tpu_custom_call.1} parent=1 // pred_check_branch
      %426 = sbr.rel (0) target = $region37
    $region36: #{tpu_custom_call.1} parent=1 // pred_region
      %427 = dma.done [#allocation3], 32
    $region37: #{tpu_custom_call.1} parent=1 // pred_fallthru
      _
    %428 = vsyncpa [#allocation3], 1

</llo_original>
